<compile_context>
chip_gen: v5e
topology: v5e:2x2
jax: 0.10.0
libtpu: 0.0.40
codegen_flags: <defaults>
</compile_context>

<pallas_src>
import jax
import jax.numpy as jnp
import numpy as np
from jax.experimental import pallas as pl
from jax.experimental.pallas import tpu as pltpu


def _rnn_kernel(ids_ref, emb_ref, wih_ref, whh_ref, b_ref,
                fc1w_ref, fc1b_ref, fc2w_ref, fc2b_ref,
                out_ref):
    B, S = ids_ref.shape
    V, E = emb_ref.shape
    H = whh_ref.shape[0]

    # ---- fused embedding gather: one-hot @ table on the MXU (exact) -----------
    # One-hot rows are emitted in (t, b) order so everything downstream is
    # time-major; only static lane slices + compares + a sublane concat (cheap,
    # done once, off the recurrence path).
    ids = ids_ref[...]                                              # (B, S) int32
    iota_v = jax.lax.broadcasted_iota(jnp.int32, (B, V), 1)         # (B, V)
    onehot_tm = jnp.concatenate(
        [(ids[:, t:t + 1] == iota_v).astype(jnp.float32) for t in range(S)],
        axis=0)                                                     # (S*B, V), rows (t, b)
    emb_tm = jnp.dot(onehot_tm, emb_ref[...],
                     preferred_element_type=jnp.float32)            # (S*B, E)

    # ---- hoisted input projection: all timesteps in one MXU matmul ------------
    xg_tm = (jnp.dot(emb_tm, wih_ref[...], preferred_element_type=jnp.float32)
             + b_ref[...])                                          # (S*B, 4H)
    xg_all = xg_tm.reshape(S, B, 4 * H)                             # time-major; layout-preserving split

    whh = whh_ref[...]                                              # resident across the loop

    # ---- serial LSTM recurrence (fully unrolled, static indices) --------------
    h = jnp.zeros((B, H), jnp.float32)
    c = jnp.zeros((B, H), jnp.float32)
    for t in range(S):                       # S small & static -> unrolled
        gates = xg_all[t] + jnp.dot(h, whh, preferred_element_type=jnp.float32)  # (B, 4H)
        act = jax.nn.sigmoid(gates)          # ONE EUP pass over all 4H lanes (g lanes unused)
        i = act[:, 0:H]
        f = act[:, H:2 * H]
        o = act[:, 3 * H:4 * H]
        g = jnp.tanh(gates[:, 2 * H:3 * H])
        c = f * c + i * g
        h = o * jnp.tanh(c)

    # ---- fc1 -> relu -> fc2 ----------------------------------------------------
    s = jnp.dot(h, fc1w_ref[...], preferred_element_type=jnp.float32) + fc1b_ref[...]
    s = jnp.maximum(s, 0.0)                  # relu
    # fc2: (H -> 1) as a VPU multiply + lane reduction (avoids an N=1 MXU matmul)
    out_ref[...] = (jnp.sum(s * fc2w_ref[...], axis=-1, keepdims=True)
                    + fc2b_ref[...])


def rnn_model_forward(x_ids, length, params):
    """Pallas implementation of RnnModel.forward (rnn_type='lstm', num_layers=1,
    unidirectional). `length` is accepted but unused, matching the PyTorch forward."""
    del length  # the reference forward ignores it too

    emb_table = params["embedding"]                  # (V, E)
    B, S = x_ids.shape
    V, E = emb_table.shape
    H = params["whh_t"].shape[0]

    # shape sanity (caller must pre-transpose weights / pre-sum biases)
    assert params["wih_t"].shape == (E, 4 * H)
    assert params["whh_t"].shape == (H, 4 * H)
    assert params["bias"].shape == (1, 4 * H)
    assert params["fc1_w_t"].shape == (H, H)
    assert params["fc1_b"].shape == (1, H)
    assert params["fc2_w"].shape == (1, H)
    assert params["fc2_b"].shape == (1, 1)

    vmem = pl.BlockSpec(memory_space=pltpu.MemorySpace.VMEM)

    out = pl.pallas_call(
        _rnn_kernel,
        out_shape=jax.ShapeDtypeStruct((B, 1), jnp.float32),
        in_specs=[vmem] * 9,
        out_specs=vmem,
    )(x_ids, emb_table, params["wih_t"], params["whh_t"], params["bias"],
      params["fc1_w_t"], params["fc1_b"], params["fc2_w"], params["fc2_b"])

    return out.reshape(-1)                           # flatten -> (B,)


def _reference_forward(x_ids, params):
    """Pure-JAX reference mirroring the PyTorch module (correctness check)."""
    emb = jnp.take(params["embedding"], x_ids, axis=0)   # (B, S, E)
    emb_t = jnp.transpose(emb, (1, 0, 2))                # (S, B, E)
    B = emb_t.shape[1]
    H = params["whh_t"].shape[0]

    def step(carry, x_t):
        h, c = carry
        gates = x_t @ params["wih_t"] + h @ params["whh_t"] + params["bias"]
        i = jax.nn.sigmoid(gates[:, 0:H])
        f = jax.nn.sigmoid(gates[:, H:2 * H])
        g = jnp.tanh(gates[:, 2 * H:3 * H])
        o = jax.nn.sigmoid(gates[:, 3 * H:4 * H])
        c = f * c + i * g
        h = o * jnp.tanh(c)
        return (h, c), None

    h0 = jnp.zeros((B, H), jnp.float32)
    (h, _), _ = jax.lax.scan(step, (h0, h0), emb_t)
    s = jnp.maximum(h @ params["fc1_w_t"] + params["fc1_b"], 0.0)
    out = s @ params["fc2_w"].T + params["fc2_b"]
    return out.reshape(-1)


def make_params(key, vocab, embed, hidden):
    ks = jax.random.split(key, 10)
    scale = 0.1
    return {
        "embedding": scale * jax.random.normal(ks[0], (vocab, embed), jnp.float32),
        "wih_t":     scale * jax.random.normal(ks[1], (embed, 4 * hidden), jnp.float32),
        "whh_t":     scale * jax.random.normal(ks[2], (hidden, 4 * hidden), jnp.float32),
        "bias":      scale * jax.random.normal(ks[3], (1, 4 * hidden), jnp.float32),
        "fc1_w_t":   scale * jax.random.normal(ks[4], (hidden, hidden), jnp.float32),
        "fc1_b":     scale * jax.random.normal(ks[5], (1, hidden), jnp.float32),
        "fc2_w":     scale * jax.random.normal(ks[6], (1, hidden), jnp.float32),
        "fc2_b":     scale * jax.random.normal(ks[7], (1, 1), jnp.float32),
    }


if __name__ == "__main__":
    # Small shapes: batch=8, seq=8, vocab=64, embed=32, hidden=32.
    B, S, V, E, H = 8, 8, 64, 32, 32
    key = jax.random.PRNGKey(0)
    kp, kx = jax.random.split(key)
    params = make_params(kp, V, E, H)

    x_ids = jax.random.randint(kx, (B, S), 0, V, dtype=jnp.int32)
    length = jnp.full((B,), S, dtype=jnp.int32)   # unused (matches PyTorch forward)

    out = jax.jit(rnn_model_forward)(x_ids, length, params)
    out = jax.block_until_ready(out)

    ref = _reference_forward(x_ids, params)
    np.testing.assert_allclose(np.asarray(out), np.asarray(ref), rtol=2e-5, atol=2e-5)
    assert out.shape == (B,)
    # TODO(synk): dropout / bidirectional / num_layers>1 / 'plain'/'gru' rnn_type
    #             variants not implemented (config chosen: lstm, 1 layer, unidir;
    #             dropout is inactive at eval).  `length` is ignored, matching the
    #             reference forward (no pack_padded_sequence masking).
    print("KERNEL_OK")
</pallas_src>

<mosaic_0001>
module attributes {stable_mosaic.version = 11 : i64} {
  func.func @_rnn_kernel(%arg0: memref<8x8xi32, #tpu.memory_space<vmem>>, %arg1: memref<64x32xf32, #tpu.memory_space<vmem>>, %arg2: memref<32x128xf32, #tpu.memory_space<vmem>>, %arg3: memref<32x128xf32, #tpu.memory_space<vmem>>, %arg4: memref<1x128xf32, #tpu.memory_space<vmem>>, %arg5: memref<32x32xf32, #tpu.memory_space<vmem>>, %arg6: memref<1x32xf32, #tpu.memory_space<vmem>>, %arg7: memref<1x32xf32, #tpu.memory_space<vmem>>, %arg8: memref<1x1xf32, #tpu.memory_space<vmem>>, %arg9: memref<8x1xf32, #tpu.memory_space<vmem>>) attributes {dimension_semantics = [], scalar_prefetch = 0 : i64, scratch_operands = 0 : i64, tpu.core_type = #tpu.core_type<tc>} {
    %c0 = arith.constant 0 : index
    %c0_0 = arith.constant 0 : index
    %0 = vector.load %arg0[%c0, %c0_0] : memref<8x8xi32, #tpu.memory_space<vmem>>, vector<8x8xi32>
    %1 = tpu.iota {dimensions = array<i32: 1>} : vector<8x64xi32>
    %2 = vector.extract_strided_slice %0 {offsets = [0, 0], sizes = [8, 1], strides = [1, 1]} : vector<8x8xi32> to vector<8x1xi32>
    %3 = vector.broadcast %2 : vector<8x1xi32> to vector<8x64xi32>
    %4 = arith.cmpi eq, %3, %1 : vector<8x64xi32>
    %5 = arith.extui %4 : vector<8x64xi1> to vector<8x64xi32>
    %6 = arith.sitofp %5 : vector<8x64xi32> to vector<8x64xf32>
    %7 = vector.extract_strided_slice %0 {offsets = [0, 1], sizes = [8, 1], strides = [1, 1]} : vector<8x8xi32> to vector<8x1xi32>
    %8 = vector.broadcast %7 : vector<8x1xi32> to vector<8x64xi32>
    %9 = arith.cmpi eq, %8, %1 : vector<8x64xi32>
    %10 = arith.extui %9 : vector<8x64xi1> to vector<8x64xi32>
    %11 = arith.sitofp %10 : vector<8x64xi32> to vector<8x64xf32>
    %12 = vector.extract_strided_slice %0 {offsets = [0, 2], sizes = [8, 1], strides = [1, 1]} : vector<8x8xi32> to vector<8x1xi32>
    %13 = vector.broadcast %12 : vector<8x1xi32> to vector<8x64xi32>
    %14 = arith.cmpi eq, %13, %1 : vector<8x64xi32>
    %15 = arith.extui %14 : vector<8x64xi1> to vector<8x64xi32>
    %16 = arith.sitofp %15 : vector<8x64xi32> to vector<8x64xf32>
    %17 = vector.extract_strided_slice %0 {offsets = [0, 3], sizes = [8, 1], strides = [1, 1]} : vector<8x8xi32> to vector<8x1xi32>
    %18 = vector.broadcast %17 : vector<8x1xi32> to vector<8x64xi32>
    %19 = arith.cmpi eq, %18, %1 : vector<8x64xi32>
    %20 = arith.extui %19 : vector<8x64xi1> to vector<8x64xi32>
    %21 = arith.sitofp %20 : vector<8x64xi32> to vector<8x64xf32>
    %22 = vector.extract_strided_slice %0 {offsets = [0, 4], sizes = [8, 1], strides = [1, 1]} : vector<8x8xi32> to vector<8x1xi32>
    %23 = vector.broadcast %22 : vector<8x1xi32> to vector<8x64xi32>
    %24 = arith.cmpi eq, %23, %1 : vector<8x64xi32>
    %25 = arith.extui %24 : vector<8x64xi1> to vector<8x64xi32>
    %26 = arith.sitofp %25 : vector<8x64xi32> to vector<8x64xf32>
    %27 = vector.extract_strided_slice %0 {offsets = [0, 5], sizes = [8, 1], strides = [1, 1]} : vector<8x8xi32> to vector<8x1xi32>
    %28 = vector.broadcast %27 : vector<8x1xi32> to vector<8x64xi32>
    %29 = arith.cmpi eq, %28, %1 : vector<8x64xi32>
    %30 = arith.extui %29 : vector<8x64xi1> to vector<8x64xi32>
    %31 = arith.sitofp %30 : vector<8x64xi32> to vector<8x64xf32>
    %32 = vector.extract_strided_slice %0 {offsets = [0, 6], sizes = [8, 1], strides = [1, 1]} : vector<8x8xi32> to vector<8x1xi32>
    %33 = vector.broadcast %32 : vector<8x1xi32> to vector<8x64xi32>
    %34 = arith.cmpi eq, %33, %1 : vector<8x64xi32>
    %35 = arith.extui %34 : vector<8x64xi1> to vector<8x64xi32>
    %36 = arith.sitofp %35 : vector<8x64xi32> to vector<8x64xf32>
    %37 = vector.extract_strided_slice %0 {offsets = [0, 7], sizes = [8, 1], strides = [1, 1]} : vector<8x8xi32> to vector<8x1xi32>
    %38 = vector.broadcast %37 : vector<8x1xi32> to vector<8x64xi32>
    %39 = arith.cmpi eq, %38, %1 : vector<8x64xi32>
    %40 = arith.extui %39 : vector<8x64xi1> to vector<8x64xi32>
    %41 = arith.sitofp %40 : vector<8x64xi32> to vector<8x64xf32>
    %42 = tpu.concatenate %6, %11, %16, %21, %26, %31, %36, %41 in 0 : vector<8x64xf32>, vector<8x64xf32>, vector<8x64xf32>, vector<8x64xf32>, vector<8x64xf32>, vector<8x64xf32>, vector<8x64xf32>, vector<8x64xf32> -> vector<64x64xf32>
    %c0_1 = arith.constant 0 : index
    %c0_2 = arith.constant 0 : index
    %43 = vector.load %arg1[%c0_1, %c0_2] : memref<64x32xf32, #tpu.memory_space<vmem>>, vector<64x32xf32>
    %cst = arith.constant dense<0.000000e+00> : vector<64x32xf32>
    %44 = tpu.matmul %42, %43, %cst {dimension_numbers = #tpu.dot_dimension_numbers<[1], [0], [0], [1], [0, 0, 1, 1], [], []>} : vector<64x64xf32>, vector<64x32xf32>, vector<64x32xf32> -> vector<64x32xf32>
    %c0_3 = arith.constant 0 : index
    %c0_4 = arith.constant 0 : index
    %45 = vector.load %arg2[%c0_3, %c0_4] : memref<32x128xf32, #tpu.memory_space<vmem>>, vector<32x128xf32>
    %cst_5 = arith.constant dense<0.000000e+00> : vector<64x128xf32>
    %46 = tpu.matmul %44, %45, %cst_5 {dimension_numbers = #tpu.dot_dimension_numbers<[1], [0], [0], [1], [0, 0, 1, 1], [], []>} : vector<64x32xf32>, vector<32x128xf32>, vector<64x128xf32> -> vector<64x128xf32>
    %c0_6 = arith.constant 0 : index
    %c0_7 = arith.constant 0 : index
    %47 = vector.load %arg4[%c0_6, %c0_7] : memref<1x128xf32, #tpu.memory_space<vmem>>, vector<1x128xf32>
    %48 = vector.broadcast %47 : vector<1x128xf32> to vector<64x128xf32>
    %49 = arith.addf %46, %48 : vector<64x128xf32>
    %50 = vector.shape_cast %49 : vector<64x128xf32> to vector<8x8x128xf32>
    %c0_8 = arith.constant 0 : index
    %c0_9 = arith.constant 0 : index
    %51 = vector.load %arg3[%c0_8, %c0_9] : memref<32x128xf32, #tpu.memory_space<vmem>>, vector<32x128xf32>
    %cst_10 = arith.constant 0.000000e+00 : f32
    %52 = vector.broadcast %cst_10 : f32 to vector<8x32xf32>
    %cst_11 = arith.constant 0.000000e+00 : f32
    %53 = vector.broadcast %cst_11 : f32 to vector<8x32xf32>
    %54 = vector.extract_strided_slice %50 {offsets = [0, 0, 0], sizes = [1, 8, 128], strides = [1, 1, 1]} : vector<8x8x128xf32> to vector<1x8x128xf32>
    %55 = vector.shape_cast %54 : vector<1x8x128xf32> to vector<8x128xf32>
    %cst_12 = arith.constant dense<0.000000e+00> : vector<8x128xf32>
    %56 = tpu.matmul %52, %51, %cst_12 {dimension_numbers = #tpu.dot_dimension_numbers<[1], [0], [0], [1], [0, 0, 1, 1], [], []>} : vector<8x32xf32>, vector<32x128xf32>, vector<8x128xf32> -> vector<8x128xf32>
    %57 = arith.addf %55, %56 : vector<8x128xf32>
    %58 = arith.negf %57 : vector<8x128xf32>
    %59 = math.exp %58 : vector<8x128xf32>
    %cst_13 = arith.constant 1.000000e+00 : f32
    %60 = vector.broadcast %cst_13 : f32 to vector<8x128xf32>
    %61 = arith.addf %60, %59 : vector<8x128xf32>
    %62 = arith.divf %60, %61 : vector<8x128xf32>
    %63 = vector.extract_strided_slice %62 {offsets = [0, 0], sizes = [8, 32], strides = [1, 1]} : vector<8x128xf32> to vector<8x32xf32>
    %64 = vector.extract_strided_slice %62 {offsets = [0, 32], sizes = [8, 32], strides = [1, 1]} : vector<8x128xf32> to vector<8x32xf32>
    %65 = vector.extract_strided_slice %62 {offsets = [0, 96], sizes = [8, 32], strides = [1, 1]} : vector<8x128xf32> to vector<8x32xf32>
    %66 = vector.extract_strided_slice %57 {offsets = [0, 64], sizes = [8, 32], strides = [1, 1]} : vector<8x128xf32> to vector<8x32xf32>
    %67 = math.tanh %66 : vector<8x32xf32>
    %68 = arith.mulf %64, %53 : vector<8x32xf32>
    %69 = arith.mulf %63, %67 : vector<8x32xf32>
    %70 = arith.addf %68, %69 : vector<8x32xf32>
    %71 = math.tanh %70 : vector<8x32xf32>
    %72 = arith.mulf %65, %71 : vector<8x32xf32>
    %73 = vector.extract_strided_slice %50 {offsets = [1, 0, 0], sizes = [1, 8, 128], strides = [1, 1, 1]} : vector<8x8x128xf32> to vector<1x8x128xf32>
    %74 = vector.shape_cast %73 : vector<1x8x128xf32> to vector<8x128xf32>
    %cst_14 = arith.constant dense<0.000000e+00> : vector<8x128xf32>
    %75 = tpu.matmul %72, %51, %cst_14 {dimension_numbers = #tpu.dot_dimension_numbers<[1], [0], [0], [1], [0, 0, 1, 1], [], []>} : vector<8x32xf32>, vector<32x128xf32>, vector<8x128xf32> -> vector<8x128xf32>
    %76 = arith.addf %74, %75 : vector<8x128xf32>
    %77 = arith.negf %76 : vector<8x128xf32>
    %78 = math.exp %77 : vector<8x128xf32>
    %cst_15 = arith.constant 1.000000e+00 : f32
    %79 = vector.broadcast %cst_15 : f32 to vector<8x128xf32>
    %80 = arith.addf %79, %78 : vector<8x128xf32>
    %81 = arith.divf %79, %80 : vector<8x128xf32>
    %82 = vector.extract_strided_slice %81 {offsets = [0, 0], sizes = [8, 32], strides = [1, 1]} : vector<8x128xf32> to vector<8x32xf32>
    %83 = vector.extract_strided_slice %81 {offsets = [0, 32], sizes = [8, 32], strides = [1, 1]} : vector<8x128xf32> to vector<8x32xf32>
    %84 = vector.extract_strided_slice %81 {offsets = [0, 96], sizes = [8, 32], strides = [1, 1]} : vector<8x128xf32> to vector<8x32xf32>
    %85 = vector.extract_strided_slice %76 {offsets = [0, 64], sizes = [8, 32], strides = [1, 1]} : vector<8x128xf32> to vector<8x32xf32>
    %86 = math.tanh %85 : vector<8x32xf32>
    %87 = arith.mulf %83, %70 : vector<8x32xf32>
    %88 = arith.mulf %82, %86 : vector<8x32xf32>
    %89 = arith.addf %87, %88 : vector<8x32xf32>
    %90 = math.tanh %89 : vector<8x32xf32>
    %91 = arith.mulf %84, %90 : vector<8x32xf32>
    %92 = vector.extract_strided_slice %50 {offsets = [2, 0, 0], sizes = [1, 8, 128], strides = [1, 1, 1]} : vector<8x8x128xf32> to vector<1x8x128xf32>
    %93 = vector.shape_cast %92 : vector<1x8x128xf32> to vector<8x128xf32>
    %cst_16 = arith.constant dense<0.000000e+00> : vector<8x128xf32>
    %94 = tpu.matmul %91, %51, %cst_16 {dimension_numbers = #tpu.dot_dimension_numbers<[1], [0], [0], [1], [0, 0, 1, 1], [], []>} : vector<8x32xf32>, vector<32x128xf32>, vector<8x128xf32> -> vector<8x128xf32>
    %95 = arith.addf %93, %94 : vector<8x128xf32>
    %96 = arith.negf %95 : vector<8x128xf32>
    %97 = math.exp %96 : vector<8x128xf32>
    %cst_17 = arith.constant 1.000000e+00 : f32
    %98 = vector.broadcast %cst_17 : f32 to vector<8x128xf32>
    %99 = arith.addf %98, %97 : vector<8x128xf32>
    %100 = arith.divf %98, %99 : vector<8x128xf32>
    %101 = vector.extract_strided_slice %100 {offsets = [0, 0], sizes = [8, 32], strides = [1, 1]} : vector<8x128xf32> to vector<8x32xf32>
    %102 = vector.extract_strided_slice %100 {offsets = [0, 32], sizes = [8, 32], strides = [1, 1]} : vector<8x128xf32> to vector<8x32xf32>
    %103 = vector.extract_strided_slice %100 {offsets = [0, 96], sizes = [8, 32], strides = [1, 1]} : vector<8x128xf32> to vector<8x32xf32>
    %104 = vector.extract_strided_slice %95 {offsets = [0, 64], sizes = [8, 32], strides = [1, 1]} : vector<8x128xf32> to vector<8x32xf32>
    %105 = math.tanh %104 : vector<8x32xf32>
    %106 = arith.mulf %102, %89 : vector<8x32xf32>
    %107 = arith.mulf %101, %105 : vector<8x32xf32>
    %108 = arith.addf %106, %107 : vector<8x32xf32>
    %109 = math.tanh %108 : vector<8x32xf32>
    %110 = arith.mulf %103, %109 : vector<8x32xf32>
    %111 = vector.extract_strided_slice %50 {offsets = [3, 0, 0], sizes = [1, 8, 128], strides = [1, 1, 1]} : vector<8x8x128xf32> to vector<1x8x128xf32>
    %112 = vector.shape_cast %111 : vector<1x8x128xf32> to vector<8x128xf32>
    %cst_18 = arith.constant dense<0.000000e+00> : vector<8x128xf32>
    %113 = tpu.matmul %110, %51, %cst_18 {dimension_numbers = #tpu.dot_dimension_numbers<[1], [0], [0], [1], [0, 0, 1, 1], [], []>} : vector<8x32xf32>, vector<32x128xf32>, vector<8x128xf32> -> vector<8x128xf32>
    %114 = arith.addf %112, %113 : vector<8x128xf32>
    %115 = arith.negf %114 : vector<8x128xf32>
    %116 = math.exp %115 : vector<8x128xf32>
    %cst_19 = arith.constant 1.000000e+00 : f32
    %117 = vector.broadcast %cst_19 : f32 to vector<8x128xf32>
    %118 = arith.addf %117, %116 : vector<8x128xf32>
    %119 = arith.divf %117, %118 : vector<8x128xf32>
    %120 = vector.extract_strided_slice %119 {offsets = [0, 0], sizes = [8, 32], strides = [1, 1]} : vector<8x128xf32> to vector<8x32xf32>
    %121 = vector.extract_strided_slice %119 {offsets = [0, 32], sizes = [8, 32], strides = [1, 1]} : vector<8x128xf32> to vector<8x32xf32>
    %122 = vector.extract_strided_slice %119 {offsets = [0, 96], sizes = [8, 32], strides = [1, 1]} : vector<8x128xf32> to vector<8x32xf32>
    %123 = vector.extract_strided_slice %114 {offsets = [0, 64], sizes = [8, 32], strides = [1, 1]} : vector<8x128xf32> to vector<8x32xf32>
    %124 = math.tanh %123 : vector<8x32xf32>
    %125 = arith.mulf %121, %108 : vector<8x32xf32>
    %126 = arith.mulf %120, %124 : vector<8x32xf32>
    %127 = arith.addf %125, %126 : vector<8x32xf32>
    %128 = math.tanh %127 : vector<8x32xf32>
    %129 = arith.mulf %122, %128 : vector<8x32xf32>
    %130 = vector.extract_strided_slice %50 {offsets = [4, 0, 0], sizes = [1, 8, 128], strides = [1, 1, 1]} : vector<8x8x128xf32> to vector<1x8x128xf32>
    %131 = vector.shape_cast %130 : vector<1x8x128xf32> to vector<8x128xf32>
    %cst_20 = arith.constant dense<0.000000e+00> : vector<8x128xf32>
    %132 = tpu.matmul %129, %51, %cst_20 {dimension_numbers = #tpu.dot_dimension_numbers<[1], [0], [0], [1], [0, 0, 1, 1], [], []>} : vector<8x32xf32>, vector<32x128xf32>, vector<8x128xf32> -> vector<8x128xf32>
    %133 = arith.addf %131, %132 : vector<8x128xf32>
    %134 = arith.negf %133 : vector<8x128xf32>
    %135 = math.exp %134 : vector<8x128xf32>
    %cst_21 = arith.constant 1.000000e+00 : f32
    %136 = vector.broadcast %cst_21 : f32 to vector<8x128xf32>
    %137 = arith.addf %136, %135 : vector<8x128xf32>
    %138 = arith.divf %136, %137 : vector<8x128xf32>
    %139 = vector.extract_strided_slice %138 {offsets = [0, 0], sizes = [8, 32], strides = [1, 1]} : vector<8x128xf32> to vector<8x32xf32>
    %140 = vector.extract_strided_slice %138 {offsets = [0, 32], sizes = [8, 32], strides = [1, 1]} : vector<8x128xf32> to vector<8x32xf32>
    %141 = vector.extract_strided_slice %138 {offsets = [0, 96], sizes = [8, 32], strides = [1, 1]} : vector<8x128xf32> to vector<8x32xf32>
    %142 = vector.extract_strided_slice %133 {offsets = [0, 64], sizes = [8, 32], strides = [1, 1]} : vector<8x128xf32> to vector<8x32xf32>
    %143 = math.tanh %142 : vector<8x32xf32>
    %144 = arith.mulf %140, %127 : vector<8x32xf32>
    %145 = arith.mulf %139, %143 : vector<8x32xf32>
    %146 = arith.addf %144, %145 : vector<8x32xf32>
    %147 = math.tanh %146 : vector<8x32xf32>
    %148 = arith.mulf %141, %147 : vector<8x32xf32>
    %149 = vector.extract_strided_slice %50 {offsets = [5, 0, 0], sizes = [1, 8, 128], strides = [1, 1, 1]} : vector<8x8x128xf32> to vector<1x8x128xf32>
    %150 = vector.shape_cast %149 : vector<1x8x128xf32> to vector<8x128xf32>
    %cst_22 = arith.constant dense<0.000000e+00> : vector<8x128xf32>
    %151 = tpu.matmul %148, %51, %cst_22 {dimension_numbers = #tpu.dot_dimension_numbers<[1], [0], [0], [1], [0, 0, 1, 1], [], []>} : vector<8x32xf32>, vector<32x128xf32>, vector<8x128xf32> -> vector<8x128xf32>
    %152 = arith.addf %150, %151 : vector<8x128xf32>
    %153 = arith.negf %152 : vector<8x128xf32>
    %154 = math.exp %153 : vector<8x128xf32>
    %cst_23 = arith.constant 1.000000e+00 : f32
    %155 = vector.broadcast %cst_23 : f32 to vector<8x128xf32>
    %156 = arith.addf %155, %154 : vector<8x128xf32>
    %157 = arith.divf %155, %156 : vector<8x128xf32>
    %158 = vector.extract_strided_slice %157 {offsets = [0, 0], sizes = [8, 32], strides = [1, 1]} : vector<8x128xf32> to vector<8x32xf32>
    %159 = vector.extract_strided_slice %157 {offsets = [0, 32], sizes = [8, 32], strides = [1, 1]} : vector<8x128xf32> to vector<8x32xf32>
    %160 = vector.extract_strided_slice %157 {offsets = [0, 96], sizes = [8, 32], strides = [1, 1]} : vector<8x128xf32> to vector<8x32xf32>
    %161 = vector.extract_strided_slice %152 {offsets = [0, 64], sizes = [8, 32], strides = [1, 1]} : vector<8x128xf32> to vector<8x32xf32>
    %162 = math.tanh %161 : vector<8x32xf32>
    %163 = arith.mulf %159, %146 : vector<8x32xf32>
    %164 = arith.mulf %158, %162 : vector<8x32xf32>
    %165 = arith.addf %163, %164 : vector<8x32xf32>
    %166 = math.tanh %165 : vector<8x32xf32>
    %167 = arith.mulf %160, %166 : vector<8x32xf32>
    %168 = vector.extract_strided_slice %50 {offsets = [6, 0, 0], sizes = [1, 8, 128], strides = [1, 1, 1]} : vector<8x8x128xf32> to vector<1x8x128xf32>
    %169 = vector.shape_cast %168 : vector<1x8x128xf32> to vector<8x128xf32>
    %cst_24 = arith.constant dense<0.000000e+00> : vector<8x128xf32>
    %170 = tpu.matmul %167, %51, %cst_24 {dimension_numbers = #tpu.dot_dimension_numbers<[1], [0], [0], [1], [0, 0, 1, 1], [], []>} : vector<8x32xf32>, vector<32x128xf32>, vector<8x128xf32> -> vector<8x128xf32>
    %171 = arith.addf %169, %170 : vector<8x128xf32>
    %172 = arith.negf %171 : vector<8x128xf32>
    %173 = math.exp %172 : vector<8x128xf32>
    %cst_25 = arith.constant 1.000000e+00 : f32
    %174 = vector.broadcast %cst_25 : f32 to vector<8x128xf32>
    %175 = arith.addf %174, %173 : vector<8x128xf32>
    %176 = arith.divf %174, %175 : vector<8x128xf32>
    %177 = vector.extract_strided_slice %176 {offsets = [0, 0], sizes = [8, 32], strides = [1, 1]} : vector<8x128xf32> to vector<8x32xf32>
    %178 = vector.extract_strided_slice %176 {offsets = [0, 32], sizes = [8, 32], strides = [1, 1]} : vector<8x128xf32> to vector<8x32xf32>
    %179 = vector.extract_strided_slice %176 {offsets = [0, 96], sizes = [8, 32], strides = [1, 1]} : vector<8x128xf32> to vector<8x32xf32>
    %180 = vector.extract_strided_slice %171 {offsets = [0, 64], sizes = [8, 32], strides = [1, 1]} : vector<8x128xf32> to vector<8x32xf32>
    %181 = math.tanh %180 : vector<8x32xf32>
    %182 = arith.mulf %178, %165 : vector<8x32xf32>
    %183 = arith.mulf %177, %181 : vector<8x32xf32>
    %184 = arith.addf %182, %183 : vector<8x32xf32>
    %185 = math.tanh %184 : vector<8x32xf32>
    %186 = arith.mulf %179, %185 : vector<8x32xf32>
    %187 = vector.extract_strided_slice %50 {offsets = [7, 0, 0], sizes = [1, 8, 128], strides = [1, 1, 1]} : vector<8x8x128xf32> to vector<1x8x128xf32>
    %188 = vector.shape_cast %187 : vector<1x8x128xf32> to vector<8x128xf32>
    %cst_26 = arith.constant dense<0.000000e+00> : vector<8x128xf32>
    %189 = tpu.matmul %186, %51, %cst_26 {dimension_numbers = #tpu.dot_dimension_numbers<[1], [0], [0], [1], [0, 0, 1, 1], [], []>} : vector<8x32xf32>, vector<32x128xf32>, vector<8x128xf32> -> vector<8x128xf32>
    %190 = arith.addf %188, %189 : vector<8x128xf32>
    %191 = arith.negf %190 : vector<8x128xf32>
    %192 = math.exp %191 : vector<8x128xf32>
    %cst_27 = arith.constant 1.000000e+00 : f32
    %193 = vector.broadcast %cst_27 : f32 to vector<8x128xf32>
    %194 = arith.addf %193, %192 : vector<8x128xf32>
    %195 = arith.divf %193, %194 : vector<8x128xf32>
    %196 = vector.extract_strided_slice %195 {offsets = [0, 0], sizes = [8, 32], strides = [1, 1]} : vector<8x128xf32> to vector<8x32xf32>
    %197 = vector.extract_strided_slice %195 {offsets = [0, 32], sizes = [8, 32], strides = [1, 1]} : vector<8x128xf32> to vector<8x32xf32>
    %198 = vector.extract_strided_slice %195 {offsets = [0, 96], sizes = [8, 32], strides = [1, 1]} : vector<8x128xf32> to vector<8x32xf32>
    %199 = vector.extract_strided_slice %190 {offsets = [0, 64], sizes = [8, 32], strides = [1, 1]} : vector<8x128xf32> to vector<8x32xf32>
    %200 = math.tanh %199 : vector<8x32xf32>
    %201 = arith.mulf %197, %184 : vector<8x32xf32>
    %202 = arith.mulf %196, %200 : vector<8x32xf32>
    %203 = arith.addf %201, %202 : vector<8x32xf32>
    %204 = math.tanh %203 : vector<8x32xf32>
    %205 = arith.mulf %198, %204 : vector<8x32xf32>
    %c0_28 = arith.constant 0 : index
    %c0_29 = arith.constant 0 : index
    %206 = vector.load %arg5[%c0_28, %c0_29] : memref<32x32xf32, #tpu.memory_space<vmem>>, vector<32x32xf32>
    %cst_30 = arith.constant dense<0.000000e+00> : vector<8x32xf32>
    %207 = tpu.matmul %205, %206, %cst_30 {dimension_numbers = #tpu.dot_dimension_numbers<[1], [0], [0], [1], [0, 0, 1, 1], [], []>} : vector<8x32xf32>, vector<32x32xf32>, vector<8x32xf32> -> vector<8x32xf32>
    %c0_31 = arith.constant 0 : index
    %c0_32 = arith.constant 0 : index
    %208 = vector.load %arg6[%c0_31, %c0_32] : memref<1x32xf32, #tpu.memory_space<vmem>>, vector<1x32xf32>
    %209 = vector.broadcast %208 : vector<1x32xf32> to vector<8x32xf32>
    %210 = arith.addf %207, %209 : vector<8x32xf32>
    %cst_33 = arith.constant 0.000000e+00 : f32
    %211 = vector.broadcast %cst_33 : f32 to vector<8x32xf32>
    %212 = arith.maximumf %210, %211 : vector<8x32xf32>
    %c0_34 = arith.constant 0 : index
    %c0_35 = arith.constant 0 : index
    %213 = vector.load %arg7[%c0_34, %c0_35] : memref<1x32xf32, #tpu.memory_space<vmem>>, vector<1x32xf32>
    %214 = vector.broadcast %213 : vector<1x32xf32> to vector<8x32xf32>
    %215 = arith.mulf %212, %214 : vector<8x32xf32>
    %cst_36 = arith.constant dense<0.000000e+00> : vector<8xf32>
    %216 = vector.multi_reduction <add>, %215, %cst_36 [1] : vector<8x32xf32> to vector<8xf32>
    %217 = vector.shape_cast %216 : vector<8xf32> to vector<8x1xf32>
    %c0_37 = arith.constant 0 : index
    %c0_38 = arith.constant 0 : index
    %218 = vector.load %arg8[%c0_37, %c0_38] : memref<1x1xf32, #tpu.memory_space<vmem>>, vector<1x1xf32>
    %219 = vector.broadcast %218 : vector<1x1xf32> to vector<8x1xf32>
    %220 = arith.addf %217, %219 : vector<8x1xf32>
    %c0_39 = arith.constant 0 : index
    %c0_40 = arith.constant 0 : index
    %221 = vector.load %arg9[%c0_39, %c0_40] : memref<8x1xf32, #tpu.memory_space<vmem>>, vector<8x1xf32>
    tpu.vector_store %arg9[%c0_39, %c0_40], %220 {strides = array<i32>} : memref<8x1xf32, #tpu.memory_space<vmem>>, vector<8x1xf32>,
    return
  }
}

</mosaic_0001>

<llo_original>
// kernel: rnn_model_forward.1
$region0: #{rnn_model_forward.1}
  #allocation0 [shape = 'u32[]', space=smem, size = 0x4, offset = 0x4, fixed_abs, tag = 'smem constant byte address 0x4 - core index']
  #allocation1 [shape = 'u32[72,128]{1,0:T(1,128)}', space=vmem, size = 0x9000, scoped, tag = 'internal scratch']
  #allocation2 [shape = 'f32[1,1]{1,0:T(1,128)S(1)}', space=vmem, size = 0x200, scoped, tag = 'scoped memory for rnn_model_forward.1']
  %s0 = inlined_call_operand.hbm [shape: s32[8,8], index: 0, kind: input, shape index: {}]
  %s1 = inlined_call_operand.vmem [shape: f32[64,32], index: 1, kind: input, shape index: {}]
  %s2 = inlined_call_operand.vmem [shape: f32[32,128], index: 2, kind: input, shape index: {}]
  %s3 = inlined_call_operand.vmem [shape: f32[32,128], index: 3, kind: input, shape index: {}]
  %s4 = inlined_call_operand.vmem [shape: f32[1,128], index: 4, kind: input, shape index: {}]
  %s5 = inlined_call_operand.vmem [shape: f32[32,32], index: 5, kind: input, shape index: {}]
  %s6 = inlined_call_operand.vmem [shape: f32[1,32], index: 6, kind: input, shape index: {}]
  %s7 = inlined_call_operand.vmem [shape: f32[1,32], index: 7, kind: input, shape index: {}]
  %s8 = inlined_call_operand.<no memory space> [shape: f32[1,1], index: 8, kind: input, shape index: {}]
  %s9 = inlined_call_operand.vmem [shape: f32[8,1], index: 9, kind: output, shape index: {}]
  %s10 = sld [smem:[#allocation0]]
  $region50: #{rnn_model_forward.1} parent=0
    _
  %s12 = ssub.s32 1, %s10
  %s13 = scalar_select 0, %s12, %s10
  %v14 = vstv %s8
  %15 = vst [vmem:[#allocation2] sm:$0x1] %v14
  $region1: #{rnn_model_forward.1} parent=0
    #allocation3 [shape = 'u8[4096]{0}', space=vmem, size = 0x1000, scoped, tag = 'input window, operand 0, single buffered']
    #allocation4 [shape = 's32[1]{0}', space=sflag, size = 0x4, scoped, tag = 'scoped memory for rnn_model_forward.1']
    %16 = vsyncpa [#allocation4], 0
    // Predicated region
    $region2: #{rnn_model_forward.1} parent=1 // pred_check
      _
    $region3: #{rnn_model_forward.1} parent=1 // pred_check_branch
      %18 = sbr.rel (0) target = $region5
    $region4: #{rnn_model_forward.1} parent=1 // pred_region
      %20 = vsyncadd [#allocation4], 0
      %s22 = sshll.u32 %s0, 4
      %s23 = int_to_ptr.hbm [resolvable:$true] %s22
      %s24 = sshll.u32 [#allocation3], 4
      %s25 = int_to_ptr.vmem [resolvable:$true] %s24
      %27 = dma.hbm_to_vmem [thread:$0]  %s23, 128, %s25, [#allocation4]
    $region5: #{rnn_model_forward.1} parent=1 // pred_fallthru
      _
    // Predicated region
    $region6: #{rnn_model_forward.1} parent=1 // pred_check
      _
    $region7: #{rnn_model_forward.1} parent=1 // pred_check_branch
      %29 = sbr.rel (0) target = $region9
    $region8: #{rnn_model_forward.1} parent=1 // pred_region
      _
    $region9: #{rnn_model_forward.1} parent=1 // pred_fallthru
      _
    // Predicated region
    $region10: #{rnn_model_forward.1} parent=1 // pred_check
      _
    $region11: #{rnn_model_forward.1} parent=1 // pred_check_branch
      %31 = sbr.rel (0) target = $region13
    $region12: #{rnn_model_forward.1} parent=1 // pred_region
      _
    $region13: #{rnn_model_forward.1} parent=1 // pred_fallthru
      _
    // Predicated region
    $region14: #{rnn_model_forward.1} parent=1 // pred_check
      _
    $region15: #{rnn_model_forward.1} parent=1 // pred_check_branch
      %33 = sbr.rel (0) target = $region17
    $region16: #{rnn_model_forward.1} parent=1 // pred_region
      _
    $region17: #{rnn_model_forward.1} parent=1 // pred_fallthru
      _
    // Predicated region
    $region18: #{rnn_model_forward.1} parent=1 // pred_check
      _
    $region19: #{rnn_model_forward.1} parent=1 // pred_check_branch
      %35 = sbr.rel (0) target = $region21
    $region20: #{rnn_model_forward.1} parent=1 // pred_region
      _
    $region21: #{rnn_model_forward.1} parent=1 // pred_fallthru
      _
    // Predicated region
    $region22: #{rnn_model_forward.1} parent=1 // pred_check
      _
    $region23: #{rnn_model_forward.1} parent=1 // pred_check_branch
      %37 = sbr.rel (0) target = $region25
    $region24: #{rnn_model_forward.1} parent=1 // pred_region
      _
    $region25: #{rnn_model_forward.1} parent=1 // pred_fallthru
      _
    // Predicated region
    $region26: #{rnn_model_forward.1} parent=1 // pred_check
      _
    $region27: #{rnn_model_forward.1} parent=1 // pred_check_branch
      %39 = sbr.rel (0) target = $region29
    $region28: #{rnn_model_forward.1} parent=1 // pred_region
      _
    $region29: #{rnn_model_forward.1} parent=1 // pred_fallthru
      _
    // Predicated region
    $region30: #{rnn_model_forward.1} parent=1 // pred_check
      _
    $region31: #{rnn_model_forward.1} parent=1 // pred_check_branch
      %41 = sbr.rel (0) target = $region33
    $region32: #{rnn_model_forward.1} parent=1 // pred_region
      _
    $region33: #{rnn_model_forward.1} parent=1 // pred_fallthru
      _
    // Predicated region
    $region34: #{rnn_model_forward.1} parent=1 // pred_check
      _
    $region35: #{rnn_model_forward.1} parent=1 // pred_check_branch
      %43 = sbr.rel (0) target = $region37
    $region36: #{rnn_model_forward.1} parent=1 // pred_region
      _
    $region37: #{rnn_model_forward.1} parent=1 // pred_fallthru
      _
    // Predicated region
    $region38: #{rnn_model_forward.1} parent=1 // pred_check
      _
    $region39: #{rnn_model_forward.1} parent=1 // pred_check_branch
      %45 = sbr.rel (0) target = $region41
    $region40: #{rnn_model_forward.1} parent=1 // pred_region
      %47 = dma.done [#allocation4], 128
    $region41: #{rnn_model_forward.1} parent=1 // pred_fallthru
      _
    %v48 = vld [vmem:[#allocation3] sm:$0xff]
    %v49 = vlaneseq
    %v50 = vand.u32 %v49, 127
    %51 = vset.pattern.permute.xlu0 0
    %52 = vperm.xlu0 %51, %v48
    %v53 = vpop.permute.xlu0 %52
    %vm54 = vcmp.eq.s32.totalorder %v53, %v50
    %v55 = vsel %vm54, 1, 0
    %v56 = vcvt.s32.f32 %v55
    %57 = vset.pattern.permute.xlu0 1
    %58 = vperm.xlu0 %57, %v48
    %v59 = vpop.permute.xlu0 %58
    %vm60 = vcmp.eq.s32.totalorder %v59, %v50
    %v61 = vsel %vm60, 1, 0
    %v62 = vcvt.s32.f32 %v61
    %63 = vset.pattern.permute.xlu0 2
    %64 = vperm.xlu0 %63, %v48
    %v65 = vpop.permute.xlu0 %64
    %vm66 = vcmp.eq.s32.totalorder %v65, %v50
    %v67 = vsel %vm66, 1, 0
    %v68 = vcvt.s32.f32 %v67
    %69 = vset.pattern.permute.xlu0 3
    %70 = vperm.xlu0 %69, %v48
    %v71 = vpop.permute.xlu0 %70
    %vm72 = vcmp.eq.s32.totalorder %v71, %v50
    %v73 = vsel %vm72, 1, 0
    %v74 = vcvt.s32.f32 %v73
    %75 = vset.pattern.permute.xlu0 4
    %76 = vperm.xlu0 %75, %v48
    %v77 = vpop.permute.xlu0 %76
    %vm78 = vcmp.eq.s32.totalorder %v77, %v50
    %v79 = vsel %vm78, 1, 0
    %v80 = vcvt.s32.f32 %v79
    %81 = vset.pattern.permute.xlu0 5
    %82 = vperm.xlu0 %81, %v48
    %v83 = vpop.permute.xlu0 %82
    %vm84 = vcmp.eq.s32.totalorder %v83, %v50
    %v85 = vsel %vm84, 1, 0
    %v86 = vcvt.s32.f32 %v85
    %87 = vset.pattern.permute.xlu0 6
    %88 = vperm.xlu0 %87, %v48
    %v89 = vpop.permute.xlu0 %88
    %vm90 = vcmp.eq.s32.totalorder %v89, %v50
    %v91 = vsel %vm90, 1, 0
    %v92 = vcvt.s32.f32 %v91
    %93 = vset.pattern.permute.xlu0 7
    %94 = vperm.xlu0 %93, %v48
    %v95 = vpop.permute.xlu0 %94
    %vm96 = vcmp.eq.s32.totalorder %v95, %v50
    %v97 = vsel %vm96, 1, 0
    %v98 = vcvt.s32.f32 %v97
    %v99 = vld [vmem:[%s1] sm:$0xff]
    %v100 = vld [vmem:[%s1 + $0x8] sm:$0xff]
    %v101 = vld [vmem:[%s1 + $0x10] sm:$0xff]
    %v102 = vld [vmem:[%s1 + $0x18] sm:$0xff]
    %v103 = vld [vmem:[%s1 + $0x20] sm:$0xff]
    %v104 = vld [vmem:[%s1 + $0x28] sm:$0xff]
    %v105 = vld [vmem:[%s1 + $0x30] sm:$0xff]
    %v106 = vld [vmem:[%s1 + $0x38] sm:$0xff]
    %vm107 = vcmask 523264
    %v109 = vsel %vm107, %v56, 0
    %v112 = vsel %vm107, %v62, 0
    %v115 = vsel %vm107, %v68, 0
    %v118 = vsel %vm107, %v74, 0
    %v121 = vsel %vm107, %v80, 0
    %v124 = vsel %vm107, %v86, 0
    %v127 = vsel %vm107, %v92, 0
    %v130 = vsel %vm107, %v98, 0
    %132 = vmatpush.msra.mxu0 0.0
    %133 = vmatpush.msra.mxu0 0.0
    %134 = vmatpush.msra.mxu0 0.0
    %135 = vmatpush.msra.mxu0 0.0
    %136 = vmatpush.msra.mxu0 0.0
    %137 = vmatpush.msra.mxu0 0.0
    %138 = vmatpush.msra.mxu0 0.0
    %139 = vmatpush.msra.mxu0 0.0
    %140 = vmatpush.msra.mxu0 %v106
    %141 = vmatpush.msra.mxu0 %v105
    %142 = vmatpush.msra.mxu0 %v104
    %143 = vmatpush.msra.mxu0 %v103
    %144 = vmatpush.msra.mxu0 %v102
    %145 = vmatpush.msra.mxu0 %v101
    %146 = vmatpush.msra.mxu0 %v100
    %147 = vmatpush.msra.mxu0 %v99
    %148 = vmatmul.f32.gmra.mxu0 %v109
    %v149 = vpop.f32.mrf.mxu0
    %v150 = vadd.f32 0.0, %v149
    %151 = vmatmul.f32.gmra.mxu0 %v112
    %v152 = vpop.f32.mrf.mxu0
    %v153 = vadd.f32 0.0, %v152
    %154 = vmatmul.f32.gmra.mxu0 %v115
    %v155 = vpop.f32.mrf.mxu0
    %v156 = vadd.f32 0.0, %v155
    %157 = vmatmul.f32.gmra.mxu0 %v118
    %v158 = vpop.f32.mrf.mxu0
    %v159 = vadd.f32 0.0, %v158
    %160 = vmatmul.f32.gmra.mxu0 %v121
    %v161 = vpop.f32.mrf.mxu0
    %v162 = vadd.f32 0.0, %v161
    %163 = vmatmul.f32.gmra.mxu0 %v124
    %v164 = vpop.f32.mrf.mxu0
    %v165 = vadd.f32 0.0, %v164
    %166 = vmatmul.f32.gmra.mxu0 %v127
    %v167 = vpop.f32.mrf.mxu0
    %v168 = vadd.f32 0.0, %v167
    %169 = vmatmul.f32.gmra.mxu0 %v130
    %v170 = vpop.f32.mrf.mxu0
    %v171 = vadd.f32 0.0, %v170
    %172 = vdwg.mxu0
    %v173 = vld [vmem:[%s2] sm:$0xff]
    %v174 = vld [vmem:[%s2 + $0x8] sm:$0xff]
    %v175 = vld [vmem:[%s2 + $0x10] sm:$0xff]
    %v176 = vld [vmem:[%s2 + $0x18] sm:$0xff]
    %v177 = vld [vmem:[%s4] sm:$0x1]
    %v179 = vperm.slane %v177, 0
    %vm181 = vcmask 261120
    %v183 = vsel %vm181, %v150, 0
    %v186 = vsel %vm181, %v153, 0
    %v189 = vsel %vm181, %v156, 0
    %v192 = vsel %vm181, %v159, 0
    %v195 = vsel %vm181, %v162, 0
    %v198 = vsel %vm181, %v165, 0
    %v201 = vsel %vm181, %v168, 0
    %v204 = vsel %vm181, %v171, 0
    %206 = vmatpush.msra.mxu0 0.0
    %207 = vmatpush.msra.mxu0 0.0
    %208 = vmatpush.msra.mxu0 0.0
    %209 = vmatpush.msra.mxu0 0.0
    %210 = vmatpush.msra.mxu0 0.0
    %211 = vmatpush.msra.mxu0 0.0
    %212 = vmatpush.msra.mxu0 0.0
    %213 = vmatpush.msra.mxu0 0.0
    %214 = vmatpush.msra.mxu0 0.0
    %215 = vmatpush.msra.mxu0 0.0
    %216 = vmatpush.msra.mxu0 0.0
    %217 = vmatpush.msra.mxu0 0.0
    %218 = vmatpush.msra.mxu0 %v176
    %219 = vmatpush.msra.mxu0 %v175
    %220 = vmatpush.msra.mxu0 %v174
    %221 = vmatpush.msra.mxu0 %v173
    %222 = vmatmul.f32.gmra.mxu0 %v183
    %v223 = vpop.f32.mrf.mxu0
    %v224 = vadd.f32 %v179, %v223
    %225 = vmatmul.f32.gmra.mxu0 %v186
    %v226 = vpop.f32.mrf.mxu0
    %v227 = vadd.f32 %v179, %v226
    %228 = vmatmul.f32.gmra.mxu0 %v189
    %v229 = vpop.f32.mrf.mxu0
    %v230 = vadd.f32 %v179, %v229
    %231 = vmatmul.f32.gmra.mxu0 %v192
    %v232 = vpop.f32.mrf.mxu0
    %v233 = vadd.f32 %v179, %v232
    %234 = vmatmul.f32.gmra.mxu0 %v195
    %v235 = vpop.f32.mrf.mxu0
    %v236 = vadd.f32 %v179, %v235
    %237 = vmatmul.f32.gmra.mxu0 %v198
    %v238 = vpop.f32.mrf.mxu0
    %v239 = vadd.f32 %v179, %v238
    %240 = vmatmul.f32.gmra.mxu0 %v201
    %v241 = vpop.f32.mrf.mxu0
    %v242 = vadd.f32 %v179, %v241
    %243 = vmatmul.f32.gmra.mxu0 %v204
    %v244 = vpop.f32.mrf.mxu0
    %v245 = vadd.f32 %v179, %v244
    %246 = vdwg.mxu0
    %v247 = vld [vmem:[%s3] sm:$0xff]
    %v248 = vld [vmem:[%s3 + $0x8] sm:$0xff]
    %v249 = vld [vmem:[%s3 + $0x10] sm:$0xff]
    %v250 = vld [vmem:[%s3 + $0x18] sm:$0xff]
    %v252 = vsel %vm181, 0.0, 0
    %254 = vmatpush.msra.mxu0 0.0
    %255 = vmatpush.msra.mxu0 0.0
    %256 = vmatpush.msra.mxu0 0.0
    %257 = vmatpush.msra.mxu0 0.0
    %258 = vmatpush.msra.mxu0 0.0
    %259 = vmatpush.msra.mxu0 0.0
    %260 = vmatpush.msra.mxu0 0.0
    %261 = vmatpush.msra.mxu0 0.0
    %262 = vmatpush.msra.mxu0 0.0
    %263 = vmatpush.msra.mxu0 0.0
    %264 = vmatpush.msra.mxu0 0.0
    %265 = vmatpush.msra.mxu0 0.0
    %266 = vmatpush.msra.mxu0 %v250
    %267 = vmatpush.msra.mxu0 %v249
    %268 = vmatpush.msra.mxu0 %v248
    %269 = vmatpush.msra.mxu0 %v247
    %270 = vmatmul.f32.gmra.mxu0 %v252
    %v271 = vpop.f32.mrf.mxu0
    %v272 = vadd.f32 0.0, %v271
    %273 = vdwg.mxu0
    %v274 = vadd.f32 %v224, %v272
    %v275 = vxor.u32 %v274, 2147483648
    %v276 = vmul.f32 %v275, 1.442695
    %v277 = vpow.pop %v276
    %v278 = vadd.f32 %v277, 1.0
    %v279 = vrcp.pop %v278
    %v280 = vmul.f32 %v278, %v279
    %v281 = vsub.f32 1.0, %v280
    %v282 = vmul.f32 %v279, %v281
    %v283 = vadd.f32 %v279, %v282
    %vm284 = vweird.f32 %v278
    %vm285 = vweird.f32 %v279
    %vm286 = vmor %vm284, %vm285
    %v287 = vsel %vm286, %v279, %v283
    %v288 = vand.u32 2147483647, %v278
    %vm289 = vcmp.eq.f32.partialorder %v288, 8.507059e+37
    %v290 = vand.u32 %v278, 2147483648
    %v291 = vor.u32 1.1754944e-38, %v290
    %v292 = vsel %vm289, %v291, %v287
    %v293 = vmul.f32 1.0, %v292
    %v294 = vtanh.pop %v274
    %v295 = vmul.f32 %v293, 0.0
    %297 = vrot.lane.b32.xlu0 %v294, 64
    %v298 = vpop.permute.xlu0 %297
    %v300 = vmul.f32 %v293, %v298
    %302 = vrot.lane.b32.xlu0 %v300, 32
    %v303 = vpop.permute.xlu0 %302
    %v305 = vadd.f32 %v295, %v303
    %v306 = vtanh.pop %v305
    %308 = vrot.lane.b32.xlu0 %v306, 64
    %v309 = vpop.permute.xlu0 %308
    %v311 = vmul.f32 %v293, %v309
    %313 = vrot.lane.b32.xlu0 %v311, 32
    %v314 = vpop.permute.xlu0 %313
    %v315 = vsel %vm181, %v314, 0
    %317 = vmatpush.msra.mxu0 0.0
    %318 = vmatpush.msra.mxu0 0.0
    %319 = vmatpush.msra.mxu0 0.0
    %320 = vmatpush.msra.mxu0 0.0
    %321 = vmatpush.msra.mxu0 0.0
    %322 = vmatpush.msra.mxu0 0.0
    %323 = vmatpush.msra.mxu0 0.0
    %324 = vmatpush.msra.mxu0 0.0
    %325 = vmatpush.msra.mxu0 0.0
    %326 = vmatpush.msra.mxu0 0.0
    %327 = vmatpush.msra.mxu0 0.0
    %328 = vmatpush.msra.mxu0 0.0
    %329 = vmatpush.msra.mxu0 %v250
    %330 = vmatpush.msra.mxu0 %v249
    %331 = vmatpush.msra.mxu0 %v248
    %332 = vmatpush.msra.mxu0 %v247
    %333 = vmatmul.f32.gmra.mxu0 %v315
    %v334 = vpop.f32.mrf.mxu0
    %v335 = vadd.f32 0.0, %v334
    %336 = vdwg.mxu0
    %v337 = vadd.f32 %v227, %v335
    %v338 = vxor.u32 %v337, 2147483648
    %v339 = vmul.f32 %v338, 1.442695
    %v340 = vpow.pop %v339
    %v341 = vadd.f32 %v340, 1.0
    %v342 = vrcp.pop %v341
    %v343 = vmul.f32 %v341, %v342
    %v344 = vsub.f32 1.0, %v343
    %v345 = vmul.f32 %v342, %v344
    %v346 = vadd.f32 %v342, %v345
    %vm347 = vweird.f32 %v341
    %vm348 = vweird.f32 %v342
    %vm349 = vmor %vm347, %vm348
    %v350 = vsel %vm349, %v342, %v346
    %v351 = vand.u32 2147483647, %v341
    %vm352 = vcmp.eq.f32.partialorder %v351, 8.507059e+37
    %v353 = vand.u32 %v341, 2147483648
    %v354 = vor.u32 1.1754944e-38, %v353
    %v355 = vsel %vm352, %v354, %v350
    %v356 = vmul.f32 1.0, %v355
    %v357 = vtanh.pop %v337
    %v358 = vmul.f32 %v356, %v305
    %360 = vrot.lane.b32.xlu0 %v357, 64
    %v361 = vpop.permute.xlu0 %360
    %v363 = vmul.f32 %v356, %v361
    %365 = vrot.lane.b32.xlu0 %v363, 32
    %v366 = vpop.permute.xlu0 %365
    %v368 = vadd.f32 %v358, %v366
    %v369 = vtanh.pop %v368
    %371 = vrot.lane.b32.xlu0 %v369, 64
    %v372 = vpop.permute.xlu0 %371
    %v374 = vmul.f32 %v356, %v372
    %376 = vrot.lane.b32.xlu0 %v374, 32
    %v377 = vpop.permute.xlu0 %376
    %v378 = vsel %vm181, %v377, 0
    %380 = vmatpush.msra.mxu0 0.0
    %381 = vmatpush.msra.mxu0 0.0
    %382 = vmatpush.msra.mxu0 0.0
    %383 = vmatpush.msra.mxu0 0.0
    %384 = vmatpush.msra.mxu0 0.0
    %385 = vmatpush.msra.mxu0 0.0
    %386 = vmatpush.msra.mxu0 0.0
    %387 = vmatpush.msra.mxu0 0.0
    %388 = vmatpush.msra.mxu0 0.0
    %389 = vmatpush.msra.mxu0 0.0
    %390 = vmatpush.msra.mxu0 0.0
    %391 = vmatpush.msra.mxu0 0.0
    %392 = vmatpush.msra.mxu0 %v250
    %393 = vmatpush.msra.mxu0 %v249
    %394 = vmatpush.msra.mxu0 %v248
    %395 = vmatpush.msra.mxu0 %v247
    %396 = vmatmul.f32.gmra.mxu0 %v378
    %v397 = vpop.f32.mrf.mxu0
    %v398 = vadd.f32 0.0, %v397
    %399 = vdwg.mxu0
    %v400 = vadd.f32 %v230, %v398
    %v401 = vxor.u32 %v400, 2147483648
    %v402 = vmul.f32 %v401, 1.442695
    %v403 = vpow.pop %v402
    %v404 = vadd.f32 %v403, 1.0
    %v405 = vrcp.pop %v404
    %v406 = vmul.f32 %v404, %v405
    %v407 = vsub.f32 1.0, %v406
    %v408 = vmul.f32 %v405, %v407
    %v409 = vadd.f32 %v405, %v408
    %vm410 = vweird.f32 %v404
    %vm411 = vweird.f32 %v405
    %vm412 = vmor %vm410, %vm411
    %v413 = vsel %vm412, %v405, %v409
    %v414 = vand.u32 2147483647, %v404
    %vm415 = vcmp.eq.f32.partialorder %v414, 8.507059e+37
    %v416 = vand.u32 %v404, 2147483648
    %v417 = vor.u32 1.1754944e-38, %v416
    %v418 = vsel %vm415, %v417, %v413
    %v419 = vmul.f32 1.0, %v418
    %v420 = vtanh.pop %v400
    %v421 = vmul.f32 %v419, %v368
    %423 = vrot.lane.b32.xlu0 %v420, 64
    %v424 = vpop.permute.xlu0 %423
    %v426 = vmul.f32 %v419, %v424
    %428 = vrot.lane.b32.xlu0 %v426, 32
    %v429 = vpop.permute.xlu0 %428
    %v431 = vadd.f32 %v421, %v429
    %v432 = vtanh.pop %v431
    %434 = vrot.lane.b32.xlu0 %v432, 64
    %v435 = vpop.permute.xlu0 %434
    %v437 = vmul.f32 %v419, %v435
    %439 = vrot.lane.b32.xlu0 %v437, 32
    %v440 = vpop.permute.xlu0 %439
    %v441 = vsel %vm181, %v440, 0
    %443 = vmatpush.msra.mxu0 0.0
    %444 = vmatpush.msra.mxu0 0.0
    %445 = vmatpush.msra.mxu0 0.0
    %446 = vmatpush.msra.mxu0 0.0
    %447 = vmatpush.msra.mxu0 0.0
    %448 = vmatpush.msra.mxu0 0.0
    %449 = vmatpush.msra.mxu0 0.0
    %450 = vmatpush.msra.mxu0 0.0
    %451 = vmatpush.msra.mxu0 0.0
    %452 = vmatpush.msra.mxu0 0.0
    %453 = vmatpush.msra.mxu0 0.0
    %454 = vmatpush.msra.mxu0 0.0
    %455 = vmatpush.msra.mxu0 %v250
    %456 = vmatpush.msra.mxu0 %v249
    %457 = vmatpush.msra.mxu0 %v248
    %458 = vmatpush.msra.mxu0 %v247
    %459 = vmatmul.f32.gmra.mxu0 %v441
    %v460 = vpop.f32.mrf.mxu0
    %v461 = vadd.f32 0.0, %v460
    %462 = vdwg.mxu0
    %v463 = vadd.f32 %v233, %v461
    %v464 = vxor.u32 %v463, 2147483648
    %v465 = vmul.f32 %v464, 1.442695
    %v466 = vpow.pop %v465
    %v467 = vadd.f32 %v466, 1.0
    %v468 = vrcp.pop %v467
    %v469 = vmul.f32 %v467, %v468
    %v470 = vsub.f32 1.0, %v469
    %v471 = vmul.f32 %v468, %v470
    %v472 = vadd.f32 %v468, %v471
    %vm473 = vweird.f32 %v467
    %vm474 = vweird.f32 %v468
    %vm475 = vmor %vm473, %vm474
    %v476 = vsel %vm475, %v468, %v472
    %v477 = vand.u32 2147483647, %v467
    %vm478 = vcmp.eq.f32.partialorder %v477, 8.507059e+37
    %v479 = vand.u32 %v467, 2147483648
    %v480 = vor.u32 1.1754944e-38, %v479
    %v481 = vsel %vm478, %v480, %v476
    %v482 = vmul.f32 1.0, %v481
    %v483 = vtanh.pop %v463
    %v484 = vmul.f32 %v482, %v431
    %486 = vrot.lane.b32.xlu0 %v483, 64
    %v487 = vpop.permute.xlu0 %486
    %v489 = vmul.f32 %v482, %v487
    %491 = vrot.lane.b32.xlu0 %v489, 32
    %v492 = vpop.permute.xlu0 %491
    %v494 = vadd.f32 %v484, %v492
    %v495 = vtanh.pop %v494
    %497 = vrot.lane.b32.xlu0 %v495, 64
    %v498 = vpop.permute.xlu0 %497
    %v500 = vmul.f32 %v482, %v498
    %502 = vrot.lane.b32.xlu0 %v500, 32
    %v503 = vpop.permute.xlu0 %502
    %v504 = vsel %vm181, %v503, 0
    %506 = vmatpush.msra.mxu0 0.0
    %507 = vmatpush.msra.mxu0 0.0
    %508 = vmatpush.msra.mxu0 0.0
    %509 = vmatpush.msra.mxu0 0.0
    %510 = vmatpush.msra.mxu0 0.0
    %511 = vmatpush.msra.mxu0 0.0
    %512 = vmatpush.msra.mxu0 0.0
    %513 = vmatpush.msra.mxu0 0.0
    %514 = vmatpush.msra.mxu0 0.0
    %515 = vmatpush.msra.mxu0 0.0
    %516 = vmatpush.msra.mxu0 0.0
    %517 = vmatpush.msra.mxu0 0.0
    %518 = vmatpush.msra.mxu0 %v250
    %519 = vmatpush.msra.mxu0 %v249
    %520 = vmatpush.msra.mxu0 %v248
    %521 = vmatpush.msra.mxu0 %v247
    %522 = vmatmul.f32.gmra.mxu0 %v504
    %v523 = vpop.f32.mrf.mxu0
    %v524 = vadd.f32 0.0, %v523
    %525 = vdwg.mxu0
    %v526 = vadd.f32 %v236, %v524
    %v527 = vxor.u32 %v526, 2147483648
    %v528 = vmul.f32 %v527, 1.442695
    %v529 = vpow.pop %v528
    %v530 = vadd.f32 %v529, 1.0
    %v531 = vrcp.pop %v530
    %v532 = vmul.f32 %v530, %v531
    %v533 = vsub.f32 1.0, %v532
    %v534 = vmul.f32 %v531, %v533
    %v535 = vadd.f32 %v531, %v534
    %vm536 = vweird.f32 %v530
    %vm537 = vweird.f32 %v531
    %vm538 = vmor %vm536, %vm537
    %v539 = vsel %vm538, %v531, %v535
    %v540 = vand.u32 2147483647, %v530
    %vm541 = vcmp.eq.f32.partialorder %v540, 8.507059e+37
    %v542 = vand.u32 %v530, 2147483648
    %v543 = vor.u32 1.1754944e-38, %v542
    %v544 = vsel %vm541, %v543, %v539
    %v545 = vmul.f32 1.0, %v544
    %v546 = vtanh.pop %v526
    %v547 = vmul.f32 %v545, %v494
    %549 = vrot.lane.b32.xlu0 %v546, 64
    %v550 = vpop.permute.xlu0 %549
    %v552 = vmul.f32 %v545, %v550
    %554 = vrot.lane.b32.xlu0 %v552, 32
    %v555 = vpop.permute.xlu0 %554
    %v557 = vadd.f32 %v547, %v555
    %v558 = vtanh.pop %v557
    %560 = vrot.lane.b32.xlu0 %v558, 64
    %v561 = vpop.permute.xlu0 %560
    %v563 = vmul.f32 %v545, %v561
    %565 = vrot.lane.b32.xlu0 %v563, 32
    %v566 = vpop.permute.xlu0 %565
    %v567 = vsel %vm181, %v566, 0
    %569 = vmatpush.msra.mxu0 0.0
    %570 = vmatpush.msra.mxu0 0.0
    %571 = vmatpush.msra.mxu0 0.0
    %572 = vmatpush.msra.mxu0 0.0
    %573 = vmatpush.msra.mxu0 0.0
    %574 = vmatpush.msra.mxu0 0.0
    %575 = vmatpush.msra.mxu0 0.0
    %576 = vmatpush.msra.mxu0 0.0
    %577 = vmatpush.msra.mxu0 0.0
    %578 = vmatpush.msra.mxu0 0.0
    %579 = vmatpush.msra.mxu0 0.0
    %580 = vmatpush.msra.mxu0 0.0
    %581 = vmatpush.msra.mxu0 %v250
    %582 = vmatpush.msra.mxu0 %v249
    %583 = vmatpush.msra.mxu0 %v248
    %584 = vmatpush.msra.mxu0 %v247
    %585 = vmatmul.f32.gmra.mxu0 %v567
    %v586 = vpop.f32.mrf.mxu0
    %v587 = vadd.f32 0.0, %v586
    %588 = vdwg.mxu0
    %v589 = vadd.f32 %v239, %v587
    %v590 = vxor.u32 %v589, 2147483648
    %v591 = vmul.f32 %v590, 1.442695
    %v592 = vpow.pop %v591
    %v593 = vadd.f32 %v592, 1.0
    %v594 = vrcp.pop %v593
    %v595 = vmul.f32 %v593, %v594
    %v596 = vsub.f32 1.0, %v595
    %v597 = vmul.f32 %v594, %v596
    %v598 = vadd.f32 %v594, %v597
    %vm599 = vweird.f32 %v593
    %vm600 = vweird.f32 %v594
    %vm601 = vmor %vm599, %vm600
    %v602 = vsel %vm601, %v594, %v598
    %v603 = vand.u32 2147483647, %v593
    %vm604 = vcmp.eq.f32.partialorder %v603, 8.507059e+37
    %v605 = vand.u32 %v593, 2147483648
    %v606 = vor.u32 1.1754944e-38, %v605
    %v607 = vsel %vm604, %v606, %v602
    %v608 = vmul.f32 1.0, %v607
    %v609 = vtanh.pop %v589
    %v610 = vmul.f32 %v608, %v557
    %612 = vrot.lane.b32.xlu0 %v609, 64
    %v613 = vpop.permute.xlu0 %612
    %v615 = vmul.f32 %v608, %v613
    %617 = vrot.lane.b32.xlu0 %v615, 32
    %v618 = vpop.permute.xlu0 %617
    %v620 = vadd.f32 %v610, %v618
    %v621 = vtanh.pop %v620
    %623 = vrot.lane.b32.xlu0 %v621, 64
    %v624 = vpop.permute.xlu0 %623
    %v626 = vmul.f32 %v608, %v624
    %628 = vrot.lane.b32.xlu0 %v626, 32
    %v629 = vpop.permute.xlu0 %628
    %v630 = vsel %vm181, %v629, 0
    %632 = vmatpush.msra.mxu0 0.0
    %633 = vmatpush.msra.mxu0 0.0
    %634 = vmatpush.msra.mxu0 0.0
    %635 = vmatpush.msra.mxu0 0.0
    %636 = vmatpush.msra.mxu0 0.0
    %637 = vmatpush.msra.mxu0 0.0
    %638 = vmatpush.msra.mxu0 0.0
    %639 = vmatpush.msra.mxu0 0.0
    %640 = vmatpush.msra.mxu0 0.0
    %641 = vmatpush.msra.mxu0 0.0
    %642 = vmatpush.msra.mxu0 0.0
    %643 = vmatpush.msra.mxu0 0.0
    %644 = vmatpush.msra.mxu0 %v250
    %645 = vmatpush.msra.mxu0 %v249
    %646 = vmatpush.msra.mxu0 %v248
    %647 = vmatpush.msra.mxu0 %v247
    %648 = vmatmul.f32.gmra.mxu0 %v630
    %v649 = vpop.f32.mrf.mxu0
    %v650 = vadd.f32 0.0, %v649
    %651 = vdwg.mxu0
    %v652 = vadd.f32 %v242, %v650
    %v653 = vxor.u32 %v652, 2147483648
    %v654 = vmul.f32 %v653, 1.442695
    %v655 = vpow.pop %v654
    %v656 = vadd.f32 %v655, 1.0
    %v657 = vrcp.pop %v656
    %v658 = vmul.f32 %v656, %v657
    %v659 = vsub.f32 1.0, %v658
    %v660 = vmul.f32 %v657, %v659
    %v661 = vadd.f32 %v657, %v660
    %vm662 = vweird.f32 %v656
    %vm663 = vweird.f32 %v657
    %vm664 = vmor %vm662, %vm663
    %v665 = vsel %vm664, %v657, %v661
    %v666 = vand.u32 2147483647, %v656
    %vm667 = vcmp.eq.f32.partialorder %v666, 8.507059e+37
    %v668 = vand.u32 %v656, 2147483648
    %v669 = vor.u32 1.1754944e-38, %v668
    %v670 = vsel %vm667, %v669, %v665
    %v671 = vmul.f32 1.0, %v670
    %v672 = vtanh.pop %v652
    %v673 = vmul.f32 %v671, %v620
    %675 = vrot.lane.b32.xlu0 %v672, 64
    %v676 = vpop.permute.xlu0 %675
    %v678 = vmul.f32 %v671, %v676
    %680 = vrot.lane.b32.xlu0 %v678, 32
    %v681 = vpop.permute.xlu0 %680
    %v683 = vadd.f32 %v673, %v681
    %v684 = vtanh.pop %v683
    %686 = vrot.lane.b32.xlu0 %v684, 64
    %v687 = vpop.permute.xlu0 %686
    %v689 = vmul.f32 %v671, %v687
    %691 = vrot.lane.b32.xlu0 %v689, 32
    %v692 = vpop.permute.xlu0 %691
    %v693 = vsel %vm181, %v692, 0
    %695 = vmatpush.msra.mxu0 0.0
    %696 = vmatpush.msra.mxu0 0.0
    %697 = vmatpush.msra.mxu0 0.0
    %698 = vmatpush.msra.mxu0 0.0
    %699 = vmatpush.msra.mxu0 0.0
    %700 = vmatpush.msra.mxu0 0.0
    %701 = vmatpush.msra.mxu0 0.0
    %702 = vmatpush.msra.mxu0 0.0
    %703 = vmatpush.msra.mxu0 0.0
    %704 = vmatpush.msra.mxu0 0.0
    %705 = vmatpush.msra.mxu0 0.0
    %706 = vmatpush.msra.mxu0 0.0
    %707 = vmatpush.msra.mxu0 %v250
    %708 = vmatpush.msra.mxu0 %v249
    %709 = vmatpush.msra.mxu0 %v248
    %710 = vmatpush.msra.mxu0 %v247
    %711 = vmatmul.f32.gmra.mxu0 %v693
    %v712 = vpop.f32.mrf.mxu0
    %v713 = vadd.f32 0.0, %v712
    %714 = vdwg.mxu0
    %v715 = vadd.f32 %v245, %v713
    %v716 = vxor.u32 %v715, 2147483648
    %v717 = vmul.f32 %v716, 1.442695
    %v718 = vpow.pop %v717
    %v719 = vadd.f32 %v718, 1.0
    %v720 = vrcp.pop %v719
    %v721 = vmul.f32 %v719, %v720
    %v722 = vsub.f32 1.0, %v721
    %v723 = vmul.f32 %v720, %v722
    %v724 = vadd.f32 %v720, %v723
    %vm725 = vweird.f32 %v719
    %vm726 = vweird.f32 %v720
    %vm727 = vmor %vm725, %vm726
    %v728 = vsel %vm727, %v720, %v724
    %v729 = vand.u32 2147483647, %v719
    %vm730 = vcmp.eq.f32.partialorder %v729, 8.507059e+37
    %v731 = vand.u32 %v719, 2147483648
    %v732 = vor.u32 1.1754944e-38, %v731
    %v733 = vsel %vm730, %v732, %v728
    %v734 = vmul.f32 1.0, %v733
    %v735 = vtanh.pop %v715
    %v736 = vmul.f32 %v734, %v683
    %738 = vrot.lane.b32.xlu0 %v735, 64
    %v739 = vpop.permute.xlu0 %738
    %v741 = vmul.f32 %v734, %v739
    %743 = vrot.lane.b32.xlu0 %v741, 32
    %v744 = vpop.permute.xlu0 %743
    %v746 = vadd.f32 %v736, %v744
    %v747 = vtanh.pop %v746
    %749 = vrot.lane.b32.xlu0 %v747, 64
    %v750 = vpop.permute.xlu0 %749
    %v752 = vmul.f32 %v734, %v750
    %v753 = vld [vmem:[%s5] sm:$0xff]
    %v754 = vld [vmem:[%s5 + $0x8] sm:$0xff]
    %v755 = vld [vmem:[%s5 + $0x10] sm:$0xff]
    %v756 = vld [vmem:[%s5 + $0x18] sm:$0xff]
    %v757 = vld [vmem:[%s6] sm:$0x1]
    %v759 = vperm.slane %v757, 0
    %762 = vrot.lane.b32.xlu0 %v752, 32
    %v763 = vpop.permute.xlu0 %762
    %v764 = vsel %vm181, %v763, 0
    %766 = vmatpush.msra.mxu0 0.0
    %767 = vmatpush.msra.mxu0 0.0
    %768 = vmatpush.msra.mxu0 0.0
    %769 = vmatpush.msra.mxu0 0.0
    %770 = vmatpush.msra.mxu0 0.0
    %771 = vmatpush.msra.mxu0 0.0
    %772 = vmatpush.msra.mxu0 0.0
    %773 = vmatpush.msra.mxu0 0.0
    %774 = vmatpush.msra.mxu0 0.0
    %775 = vmatpush.msra.mxu0 0.0
    %776 = vmatpush.msra.mxu0 0.0
    %777 = vmatpush.msra.mxu0 0.0
    %778 = vmatpush.msra.mxu0 %v756
    %779 = vmatpush.msra.mxu0 %v755
    %780 = vmatpush.msra.mxu0 %v754
    %781 = vmatpush.msra.mxu0 %v753
    %782 = vmatmul.f32.gmra.mxu0 %v764
    %v783 = vpop.f32.mrf.mxu0
    %v784 = vadd.f32 %v759, %v783
    %785 = vdwg.mxu0
    %v786 = vmax.f32 %v784, 0.0
    %v787 = vld [vmem:[%s7] sm:$0x1]
    %v789 = vperm.slane %v787, 0
    %v791 = vmul.f32 %v786, %v789
    %v792 = vsel %vm181, %v791, 0.0
    %793 = vadd.xlane.f32.xlu0 %v792
    %v794 = vpop.xlane.xlu0 %793
    %v795 = vld [vmem:[#allocation2] sm:$0x1]
    %v797 = vperm.slane %v795, 0
    %v799 = vadd.f32 %v794, %v797
    %vm800 = vcmask 7168
    %801 = vst.msk [vmem:[%s9] sm:$0xff] %vm800, %v799
    // Predicated region
    $region42: #{rnn_model_forward.1} parent=1 // pred_check
      _
    $region43: #{rnn_model_forward.1} parent=1 // pred_check_branch
      %803 = sbr.rel (0) target = $region45
    $region44: #{rnn_model_forward.1} parent=1 // pred_region
      _
    $region45: #{rnn_model_forward.1} parent=1 // pred_fallthru
      _
    // Predicated region
    $region46: #{rnn_model_forward.1} parent=1 // pred_check
      _
    $region47: #{rnn_model_forward.1} parent=1 // pred_check_branch
      %805 = sbr.rel (0) target = $region49
    $region48: #{rnn_model_forward.1} parent=1 // pred_region
      _
    $region49: #{rnn_model_forward.1} parent=1 // pred_fallthru
      _
    %806 = vsyncpa [#allocation4], 1

</llo_original>
